<compile_context>
chip_gen: v6e
topology: v6e:2x2x1
jax: 0.10.0
libtpu: 0.0.40
codegen_flags: <defaults>
</compile_context>

<pallas_src>
import math

import jax
import jax.numpy as jnp
from jax.experimental import pallas as pl
from jax.experimental.pallas import tpu as pltpu


# ---------------------------------------------------------------------------
# Fused FFN kernel:  y = relu(x @ W1 + b1) @ W2 + b2
#   grid = (num_row_tiles,)   -- weights fully VMEM-resident
# ---------------------------------------------------------------------------
def _ffn_kernel(x_ref, w1_ref, b1_ref, w2_ref, b2_ref, o_ref):
    # In-kernel bf16 cast of the activation tile (VPU cast, hides under MXU
    # slack; avoids a separate XLA cast kernel over x in HBM).
    x = x_ref[...].astype(jnp.bfloat16)

    # fc1: (tm, D) @ (D, F) on the MXU with f32 accumulation.
    h = jnp.dot(x, w1_ref[...], preferred_element_type=jnp.float32)
    # bias + ReLU in f32 on the VPU; hidden tile never leaves VMEM.
    h = jnp.maximum(h + b1_ref[...], 0.0)

    # fc2: (tm, F) @ (F, D); write straight into the f32 output block.
    y = jnp.dot(h.astype(jnp.bfloat16), w2_ref[...],
                preferred_element_type=jnp.float32)
    o_ref[...] = (y + b2_ref[...]).astype(o_ref.dtype)


# ---------------------------------------------------------------------------
# One-time parameter preparation (PyTorch nn.Linear layout: W (out, in), b (out,))
# ---------------------------------------------------------------------------
def prepare_ffn_params(w1, b1, w2, b2):
    """Transpose / bf16-cast / reshape ONCE at parameter-load time."""
    d_ff, d_model = w1.shape
    return dict(
        w1_t=jnp.asarray(w1).T.astype(jnp.bfloat16),                # (d_model, d_ff)
        b1=jnp.asarray(b1).reshape(1, d_ff).astype(jnp.float32),    # (1, d_ff)
        w2_t=jnp.asarray(w2).T.astype(jnp.bfloat16),                # (d_ff, d_model)
        b2=jnp.asarray(b2).reshape(1, d_model).astype(jnp.float32), # (1, d_model)
    )


def _pick_tm(M, block_m):
    """Row-tile size: multiple of 8, capped at block_m, and (when M allows)
    chosen so there are >= 2 row tiles so v7x's 2 TensorCores both get work."""
    tm = min(block_m, max(8, ((M + 7) // 8) * 8))
    if M > 8 and pl.cdiv(M, tm) < 2:
        tm = max(8, (((M + 1) // 2 + 7) // 8) * 8)
    return tm


# ---------------------------------------------------------------------------
# Forward wrapper
# ---------------------------------------------------------------------------
def position_wise_feed_forward(x, params, *, block_m=512):
    """x: (..., d_model) f32.  params: output of prepare_ffn_params.
    Returns (..., d_model) f32."""
    w1_t, b1 = params["w1_t"], params["b1"]
    w2_t, b2 = params["w2_t"], params["b2"]
    d_model, d_ff = w1_t.shape

    orig_shape = x.shape
    assert orig_shape[-1] == d_model
    M = math.prod(orig_shape[:-1]) if len(orig_shape) > 1 else 1
    x2 = x.reshape(M, d_model).astype(jnp.float32)

    tm = _pick_tm(M, block_m)
    M_pad = ((M + tm - 1) // tm) * tm
    if M_pad != M:
        # Padded rows compute relu(b1) @ W2 + b2 (harmless garbage); they are
        # sliced off before returning.
        x2 = jnp.pad(x2, ((0, M_pad - M), (0, 0)))

    grid = (M_pad // tm,)

    out = pl.pallas_call(
        _ffn_kernel,
        out_shape=jax.ShapeDtypeStruct((M_pad, d_model), jnp.float32),
        grid_spec=pltpu.PrefetchScalarGridSpec(
            num_scalar_prefetch=0,
            grid=grid,
            in_specs=[
                pl.BlockSpec((tm, d_model),   lambda i: (i, 0)),  # x row tile
                pl.BlockSpec((d_model, d_ff), lambda i: (0, 0)),  # W1 (resident)
                pl.BlockSpec((1, d_ff),       lambda i: (0, 0)),  # b1 (resident)
                pl.BlockSpec((d_ff, d_model), lambda i: (0, 0)),  # W2 (resident)
                pl.BlockSpec((1, d_model),    lambda i: (0, 0)),  # b2 (resident)
            ],
            out_specs=pl.BlockSpec((tm, d_model), lambda i: (i, 0)),
        ),
        compiler_params=pltpu.CompilerParams(
            dimension_semantics=("parallel",),
            vmem_limit_bytes=32 * 1024 * 1024,  # explicit: v5e default is 16 MiB
        ),
    )(x2, w1_t, b1, w2_t, b2)

    if M_pad != M:
        out = out[:M]
    return out.reshape(*orig_shape[:-1], d_model)


# ---------------------------------------------------------------------------
# Pure-JAX references
# ---------------------------------------------------------------------------
def _ref_bf16(x, w1, b1, w2, b2):
    # Same math as the kernel: bf16 matmul inputs, f32 accumulation/epilogue.
    h = jnp.dot(x.astype(jnp.bfloat16), w1.T.astype(jnp.bfloat16),
                preferred_element_type=jnp.float32) + b1
    h = jnp.maximum(h, 0.0)
    return jnp.dot(h.astype(jnp.bfloat16), w2.T.astype(jnp.bfloat16),
                   preferred_element_type=jnp.float32) + b2


def _ref_f32(x, w1, b1, w2, b2):
    HI = jax.lax.Precision.HIGHEST
    h = jnp.maximum(jnp.dot(x, w1.T, precision=HI) + b1, 0.0)
    return jnp.dot(h, w2.T, precision=HI) + b2


# ---------------------------------------------------------------------------
# Main
# ---------------------------------------------------------------------------
if __name__ == "__main__":
    B, S = 4, 64
    D_MODEL, D_FF = 128, 512     # lane-dense (multiples of 128)

    key = jax.random.PRNGKey(0)
    kx, k1, k2, k3, k4 = jax.random.split(key, 5)

    x = jax.random.normal(kx, (B, S, D_MODEL), jnp.float32)
    # PyTorch nn.Linear layout: weight (out, in), bias (out,)
    w1 = jax.random.normal(k1, (D_FF, D_MODEL), jnp.float32) / math.sqrt(D_MODEL)
    b1 = 0.01 * jax.random.normal(k2, (D_FF,), jnp.float32)
    w2 = jax.random.normal(k3, (D_MODEL, D_FF), jnp.float32) / math.sqrt(D_FF)
    b2 = 0.01 * jax.random.normal(k4, (D_MODEL,), jnp.float32)

    # Parameter prep happens ONCE (load time), not per forward call.
    params = prepare_ffn_params(w1, b1, w2, b2)

    out = position_wise_feed_forward(x, params)
    out = jax.block_until_ready(out)

    assert out.shape == (B, S, D_MODEL), out.shape
    assert bool(jnp.all(jnp.isfinite(out)))

    # Tight check vs. a reference using the exact same bf16-matmul math.
    ref_bf = jax.block_until_ready(_ref_bf16(x, w1, b1, w2, b2))
    err_bf = float(jnp.max(jnp.abs(out - ref_bf)))
    assert err_bf < 5e-3, f"mismatch vs bf16 reference: {err_bf}"

    # Loose sanity check vs. the full-f32 PyTorch-equivalent math
    # (bf16 MXU inputs are an intentional precision trade-off).
    ref32 = jax.block_until_ready(_ref_f32(x, w1, b1, w2, b2))
    err32 = float(jnp.max(jnp.abs(out - ref32)))
    assert err32 < 1e-1, f"mismatch vs f32 reference: {err32}"

    print("KERNEL_OK")
</pallas_src>

<mosaic_0001>
module attributes {stable_mosaic.version = 11 : i64} {
  func.func @_ffn_kernel(%arg0: i32, %arg1: memref<128x128xf32, #tpu.memory_space<vmem>>, %arg2: memref<128x512xbf16, #tpu.memory_space<vmem>>, %arg3: memref<1x512xf32, #tpu.memory_space<vmem>>, %arg4: memref<512x128xbf16, #tpu.memory_space<vmem>>, %arg5: memref<1x128xf32, #tpu.memory_space<vmem>>, %arg6: memref<128x128xf32, #tpu.memory_space<vmem>>) attributes {dimension_semantics = [#tpu.dimension_semantics<parallel>], iteration_bounds = array<i64: 2>, scalar_prefetch = 0 : i64, scratch_operands = 0 : i64, tpu.core_type = #tpu.core_type<tc>, window_params = [{transform_indices = @transform_0, window_bounds = array<i64: 128, 128>}, {pipeline_mode = #tpu.pipeline_mode<synchronous>, transform_indices = @transform_1, window_bounds = array<i64: 128, 512>}, {pipeline_mode = #tpu.pipeline_mode<synchronous>, transform_indices = @transform_2, window_bounds = array<i64: 1, 512>}, {pipeline_mode = #tpu.pipeline_mode<synchronous>, transform_indices = @transform_3, window_bounds = array<i64: 512, 128>}, {pipeline_mode = #tpu.pipeline_mode<synchronous>, transform_indices = @transform_4, window_bounds = array<i64: 1, 128>}, {transform_indices = @transform_5, window_bounds = array<i64: 128, 128>}]} {
    %c0 = arith.constant 0 : index
    %c0_0 = arith.constant 0 : index
    %0 = vector.load %arg1[%c0, %c0_0] : memref<128x128xf32, #tpu.memory_space<vmem>>, vector<128x128xf32>
    %1 = arith.truncf %0 : vector<128x128xf32> to vector<128x128xbf16>
    %c0_1 = arith.constant 0 : index
    %c0_2 = arith.constant 0 : index
    %2 = vector.load %arg2[%c0_1, %c0_2] : memref<128x512xbf16, #tpu.memory_space<vmem>>, vector<128x512xbf16>
    %cst = arith.constant dense<0.000000e+00> : vector<128x512xf32>
    %3 = tpu.matmul %1, %2, %cst {dimension_numbers = #tpu.dot_dimension_numbers<[1], [0], [0], [1], [0, 0, 1, 1], [], []>} : vector<128x128xbf16>, vector<128x512xbf16>, vector<128x512xf32> -> vector<128x512xf32>
    %c0_3 = arith.constant 0 : index
    %c0_4 = arith.constant 0 : index
    %4 = vector.load %arg3[%c0_3, %c0_4] : memref<1x512xf32, #tpu.memory_space<vmem>>, vector<1x512xf32>
    %5 = vector.broadcast %4 : vector<1x512xf32> to vector<128x512xf32>
    %6 = arith.addf %3, %5 : vector<128x512xf32>
    %cst_5 = arith.constant 0.000000e+00 : f32
    %7 = vector.broadcast %cst_5 : f32 to vector<128x512xf32>
    %8 = arith.maximumf %6, %7 : vector<128x512xf32>
    %9 = arith.truncf %8 : vector<128x512xf32> to vector<128x512xbf16>
    %c0_6 = arith.constant 0 : index
    %c0_7 = arith.constant 0 : index
    %10 = vector.load %arg4[%c0_6, %c0_7] : memref<512x128xbf16, #tpu.memory_space<vmem>>, vector<512x128xbf16>
    %cst_8 = arith.constant dense<0.000000e+00> : vector<128x128xf32>
    %11 = tpu.matmul %9, %10, %cst_8 {dimension_numbers = #tpu.dot_dimension_numbers<[1], [0], [0], [1], [0, 0, 1, 1], [], []>} : vector<128x512xbf16>, vector<512x128xbf16>, vector<128x128xf32> -> vector<128x128xf32>
    %c0_9 = arith.constant 0 : index
    %c0_10 = arith.constant 0 : index
    %12 = vector.load %arg5[%c0_9, %c0_10] : memref<1x128xf32, #tpu.memory_space<vmem>>, vector<1x128xf32>
    %13 = vector.broadcast %12 : vector<1x128xf32> to vector<128x128xf32>
    %14 = arith.addf %11, %13 : vector<128x128xf32>
    %c0_11 = arith.constant 0 : index
    %c0_12 = arith.constant 0 : index
    %15 = vector.load %arg6[%c0_11, %c0_12] : memref<128x128xf32, #tpu.memory_space<vmem>>, vector<128x128xf32>
    tpu.vector_store %arg6[%c0_11, %c0_12], %14 {strides = array<i32>} : memref<128x128xf32, #tpu.memory_space<vmem>>, vector<128x128xf32>,
    return
  }
  func.func @transform_0(%arg0: i32) -> (i32, i32) {
    %c0_i32 = arith.constant 0 : i32
    %c0_i32_0 = arith.constant 0 : i32
    return %arg0, %c0_i32 : i32, i32
  }
  func.func @transform_1(%arg0: i32) -> (i32, i32) {
    %c0_i32 = arith.constant 0 : i32
    %c0_i32_0 = arith.constant 0 : i32
    %c0_i32_1 = arith.constant 0 : i32
    return %c0_i32, %c0_i32_0 : i32, i32
  }
  func.func @transform_2(%arg0: i32) -> (i32, i32) {
    %c0_i32 = arith.constant 0 : i32
    %c0_i32_0 = arith.constant 0 : i32
    %c0_i32_1 = arith.constant 0 : i32
    return %c0_i32, %c0_i32_0 : i32, i32
  }
  func.func @transform_3(%arg0: i32) -> (i32, i32) {
    %c0_i32 = arith.constant 0 : i32
    %c0_i32_0 = arith.constant 0 : i32
    %c0_i32_1 = arith.constant 0 : i32
    return %c0_i32, %c0_i32_0 : i32, i32
  }
  func.func @transform_4(%arg0: i32) -> (i32, i32) {
    %c0_i32 = arith.constant 0 : i32
    %c0_i32_0 = arith.constant 0 : i32
    %c0_i32_1 = arith.constant 0 : i32
    return %c0_i32, %c0_i32_0 : i32, i32
  }
  func.func @transform_5(%arg0: i32) -> (i32, i32) {
    %c0_i32 = arith.constant 0 : i32
    %c0_i32_0 = arith.constant 0 : i32
    return %arg0, %c0_i32 : i32, i32
  }
}

</mosaic_0001>

<llo_original>
// kernel: tpu_custom_call.1
$region0: #{tpu_custom_call.1}
  #allocation0 [shape = 'u32[]', space=smem, size = 0x4, offset = 0x4, fixed_abs, tag = 'smem constant byte address 0x4 - core index']
  #allocation1 [shape = 'u32[144,128]{1,0:T(1,128)}', space=vmem, size = 0x12000, scoped, tag = 'internal scratch']
  %s0 = inlined_call_operand.hbm [shape: f32[256,128], index: 0, kind: input, shape index: {}]
  %s1 = inlined_call_operand.hbm [shape: bf16[128,512], index: 1, kind: input, shape index: {}]
  %s2 = inlined_call_operand.hbm [shape: f32[1,512], index: 2, kind: input, shape index: {}]
  %s3 = inlined_call_operand.hbm [shape: bf16[512,128], index: 3, kind: input, shape index: {}]
  %s4 = inlined_call_operand.vmem [shape: f32[1,128], index: 4, kind: input, shape index: {}]
  %s5 = inlined_call_operand.hbm [shape: f32[256,128], index: 5, kind: output, shape index: {}]
  %s6 = sld [smem:[#allocation0]]
  $region69: #{tpu_custom_call.1} parent=0
    _
  %s8 = ssub.s32 1, %s6
  %s9 = scalar_select 0, %s8, %s6
  $region1: #{tpu_custom_call.1} parent=0
    #allocation2 [shape = 'u8[131072]{0}', space=vmem, size = 0x20000, scoped, tag = 'input window, operand 0']
    #allocation3 [shape = 's32[2]{0}', space=sflag, size = 0x8, scoped, tag = 'scoped memory for tpu_custom_call.1']
    #allocation4 [shape = 's32[2]{0}', space=sflag, size = 0x8, scoped, tag = 'scoped memory for tpu_custom_call.1']
    #allocation5 [shape = 'u8[131072]{0}', space=vmem, size = 0x20000, scoped, tag = 'input window, operand 1, single buffered']
    #allocation6 [shape = 's32[1]{0}', space=sflag, size = 0x4, scoped, tag = 'scoped memory for tpu_custom_call.1']
    #allocation7 [shape = 'u8[2048]{0}', space=vmem, size = 0x800, scoped, tag = 'input window, operand 2, single buffered']
    #allocation8 [shape = 'u8[131072]{0}', space=vmem, size = 0x20000, scoped, tag = 'input window, operand 3, single buffered']
    #allocation9 [shape = 's32[1]{0}', space=sflag, size = 0x4, scoped, tag = 'scoped memory for tpu_custom_call.1']
    #allocation10 [shape = 'u8[131072]{0}', space=vmem, size = 0x20000, scoped, tag = 'output window, operand 0']
    %10 = vsyncpa [#allocation3], 0
    %s11 = scalar_lea.sflag [#allocation3], 1
    %12 = vsyncpa %s11, 0
    %13 = vsyncpa [#allocation6], 0
    %14 = vsyncpa [#allocation9], 0
    %15 = vsyncpa [#allocation4], 0
    %s16 = scalar_lea.sflag [#allocation4], 1
    %17 = vsyncpa %s16, 0
    loop: start=0, step=1, limit=4
    $region2: #{tpu_custom_call.1} parent=1 // loop_pre_header
      _
    $region3: #{tpu_custom_call.1} parent=1 // loop_header
      %s19 = sphi 0, %s23
      %p20 = scmp.ge.s32.totalorder %s19, 4
      %s29 = sphi 0, %s31
      %s32 = sphi 0, %s29
      %s33 = sphi 0, %s32
      %s49 = sphi 0, %s33
      %s53 = sphi 0, %s53
      %s55 = sphi 0, %s53
      %s56 = sphi 0, %s55
      %s70 = sphi 0, %s56
      %s74 = sphi 0, %s74
      %s76 = sphi 0, %s74
      %s77 = sphi 0, %s76
      %s91 = sphi 0, %s77
      %s95 = sphi 0, %s95
      %s97 = sphi 0, %s95
      %s98 = sphi 0, %s97
      %s112 = sphi 0, %s98
      %s116 = sphi 0, %s116
      %s118 = sphi 0, %s116
      %s119 = sphi 0, %s118
      %s133 = sphi 0, %s119
      %s139 = sphi 0, %s141
      %s142 = sphi 0, %s139
      %s143 = sphi 0, %s142
      %s159 = sphi 0, %s143
    $region4: #{tpu_custom_call.1} parent=1 // loop_header_branch
      %22 = sbr.rel (%p20) target = $region8
    $region5: #{tpu_custom_call.1} parent=1 // loop_body
      %s24 = ssub.s32 %s19, 1
      %s25 = ssub.s32 %s19, 2
      %s26 = sadd.s32 %s19, 1
      %s27 = ssub.s32 %s19, %s26
      %p28 = scmp.eq.s32.totalorder %s27, 0
      %s30 = sadd.s32 %s29, 1
      %s31 = scalar_select %p28, %s29, %s30
      %p34 = pneg %p28
      %p35 = scmp.eq.s32.totalorder %s19, 1
      %p36 = por %p34, %p35
      %p37 = scmp.ne.s32.totalorder %s29, %s32
      %p38 = scmp.eq.s32.totalorder %s19, 0
      %p39 = por %p37, %p38
      %p40 = scmp.ne.s32.totalorder %s29, %s32
      %p41 = scmp.eq.s32.totalorder %s24, 1
      %p42 = por %p40, %p41
      %p43 = scmp.ne.s32.totalorder %s32, %s33
      %p44 = scmp.eq.s32.totalorder %s24, 0
      %p45 = por %p43, %p44
      %p46 = scmp.ne.s32.totalorder %s32, %s33
      %p47 = scmp.eq.s32.totalorder %s25, 1
      %p48 = por %p46, %p47
      %p50 = scmp.ne.s32.totalorder %s33, %s49
      %p51 = scmp.eq.s32.totalorder %s25, 0
      %p52 = por %p50, %p51
      %s54 = sadd.s32 %s53, 1
      %p57 = scmp.eq.s32.totalorder %s19, 1
      %p58 = scmp.ne.s32.totalorder %s53, %s55
      %p59 = scmp.eq.s32.totalorder %s19, 0
      %p60 = por %p58, %p59
      %p61 = scmp.ne.s32.totalorder %s53, %s55
      %p62 = scmp.eq.s32.totalorder %s24, 1
      %p63 = por %p61, %p62
      %p64 = scmp.ne.s32.totalorder %s55, %s56
      %p65 = scmp.eq.s32.totalorder %s24, 0
      %p66 = por %p64, %p65
      %p67 = scmp.ne.s32.totalorder %s55, %s56
      %p68 = scmp.eq.s32.totalorder %s25, 1
      %p69 = por %p67, %p68
      %p71 = scmp.ne.s32.totalorder %s56, %s70
      %p72 = scmp.eq.s32.totalorder %s25, 0
      %p73 = por %p71, %p72
      %s75 = sadd.s32 %s74, 1
      %p78 = scmp.eq.s32.totalorder %s19, 1
      %p79 = scmp.ne.s32.totalorder %s74, %s76
      %p80 = scmp.eq.s32.totalorder %s19, 0
      %p81 = por %p79, %p80
      %p82 = scmp.ne.s32.totalorder %s74, %s76
      %p83 = scmp.eq.s32.totalorder %s24, 1
      %p84 = por %p82, %p83
      %p85 = scmp.ne.s32.totalorder %s76, %s77
      %p86 = scmp.eq.s32.totalorder %s24, 0
      %p87 = por %p85, %p86
      %p88 = scmp.ne.s32.totalorder %s76, %s77
      %p89 = scmp.eq.s32.totalorder %s25, 1
      %p90 = por %p88, %p89
      %p92 = scmp.ne.s32.totalorder %s77, %s91
      %p93 = scmp.eq.s32.totalorder %s25, 0
      %p94 = por %p92, %p93
      %s96 = sadd.s32 %s95, 1
      %p99 = scmp.eq.s32.totalorder %s19, 1
      %p100 = scmp.ne.s32.totalorder %s95, %s97
      %p101 = scmp.eq.s32.totalorder %s19, 0
      %p102 = por %p100, %p101
      %p103 = scmp.ne.s32.totalorder %s95, %s97
      %p104 = scmp.eq.s32.totalorder %s24, 1
      %p105 = por %p103, %p104
      %p106 = scmp.ne.s32.totalorder %s97, %s98
      %p107 = scmp.eq.s32.totalorder %s24, 0
      %p108 = por %p106, %p107
      %p109 = scmp.ne.s32.totalorder %s97, %s98
      %p110 = scmp.eq.s32.totalorder %s25, 1
      %p111 = por %p109, %p110
      %p113 = scmp.ne.s32.totalorder %s98, %s112
      %p114 = scmp.eq.s32.totalorder %s25, 0
      %p115 = por %p113, %p114
      %s117 = sadd.s32 %s116, 1
      %p120 = scmp.eq.s32.totalorder %s19, 1
      %p121 = scmp.ne.s32.totalorder %s116, %s118
      %p122 = scmp.eq.s32.totalorder %s19, 0
      %p123 = por %p121, %p122
      %p124 = scmp.ne.s32.totalorder %s116, %s118
      %p125 = scmp.eq.s32.totalorder %s24, 1
      %p126 = por %p124, %p125
      %p127 = scmp.ne.s32.totalorder %s118, %s119
      %p128 = scmp.eq.s32.totalorder %s24, 0
      %p129 = por %p127, %p128
      %p130 = scmp.ne.s32.totalorder %s118, %s119
      %p131 = scmp.eq.s32.totalorder %s25, 1
      %p132 = por %p130, %p131
      %p134 = scmp.ne.s32.totalorder %s119, %s133
      %p135 = scmp.eq.s32.totalorder %s25, 0
      %p136 = por %p134, %p135
      %s137 = ssub.s32 %s19, %s26
      %p138 = scmp.eq.s32.totalorder %s137, 0
      %s140 = sadd.s32 %s139, 1
      %s141 = scalar_select %p138, %s139, %s140
      %p144 = pneg %p138
      %p145 = scmp.eq.s32.totalorder %s19, 1
      %p146 = por %p144, %p145
      %p147 = scmp.ne.s32.totalorder %s139, %s142
      %p148 = scmp.eq.s32.totalorder %s19, 0
      %p149 = por %p147, %p148
      %p150 = scmp.ne.s32.totalorder %s139, %s142
      %p151 = scmp.eq.s32.totalorder %s24, 1
      %p152 = por %p150, %p151
      %p153 = scmp.ne.s32.totalorder %s142, %s143
      %p154 = scmp.eq.s32.totalorder %s24, 0
      %p155 = por %p153, %p154
      %p156 = scmp.ne.s32.totalorder %s142, %s143
      %p157 = scmp.eq.s32.totalorder %s25, 1
      %p158 = por %p156, %p157
      %p160 = scmp.ne.s32.totalorder %s143, %s159
      %p161 = scmp.eq.s32.totalorder %s25, 0
      %p162 = por %p160, %p161
      %p163 = scmp.le.s32.totalorder 1, %s19
      %p164 = scmp.lt.s32.totalorder %s19, 3
      %p165 = pnand %p163, %p164
      %p166 = pneg %p165
      // Predicated region
      $region9: #{tpu_custom_call.1} parent=5 // pred_check
        _
      $region10: #{tpu_custom_call.1} parent=5 // pred_check_branch
        %168 = sbr.rel (%p165) target = $region12
      $region11: #{tpu_custom_call.1} parent=5 // pred_region
        %s169 = ssub.s32 %s19, 1
        // Predicated region
        $region13: #{tpu_custom_call.1} parent=11 // pred_check
          %p170 = pneg %p66
        $region14: #{tpu_custom_call.1} parent=11 // pred_check_branch
          %172 = sbr.rel (%p170) target = $region16
        $region15: #{tpu_custom_call.1} parent=11 // pred_region
          %s174 = ssub.s32 4096, 4096
          %175 = vsyncadd [#allocation6], %s174
          %s176 = sshll.u32 [#allocation5], 4
          %s177 = int_to_ptr.vmem [resolvable:$true] %s176
          %182 = dma.hbm_to_vmem [thread:$0]  %s1, 4096, %s177, [#allocation6], 256, 256, 16
        $region16: #{tpu_custom_call.1} parent=11 // pred_fallthru
          _
        // Predicated region
        $region17: #{tpu_custom_call.1} parent=11 // pred_check
          %p183 = pneg %p87
        $region18: #{tpu_custom_call.1} parent=11 // pred_check_branch
          %185 = sbr.rel (%p183) target = $region20
        $region19: #{tpu_custom_call.1} parent=11 // pred_region
          %s187 = ssub.s32 64, 64
          %188 = vsyncadd [#allocation6], %s187
          %s190 = sshll.u32 [#allocation7], 4
          %s191 = int_to_ptr.vmem [resolvable:$true] %s190
          %193 = dma.hbm_to_vmem [thread:$0]  %s2, 64, %s191, [#allocation6]
        $region20: #{tpu_custom_call.1} parent=11 // pred_fallthru
          _
        // Predicated region
        $region21: #{tpu_custom_call.1} parent=11 // pred_check
          %p194 = pneg %p108
        $region22: #{tpu_custom_call.1} parent=11 // pred_check_branch
          %196 = sbr.rel (%p194) target = $region24
        $region23: #{tpu_custom_call.1} parent=11 // pred_region
          %s198 = ssub.s32 4096, 4096
          %199 = vsyncadd [#allocation9], %s198
          %s200 = sshll.u32 [#allocation8], 4
          %s201 = int_to_ptr.vmem [resolvable:$true] %s200
          %206 = dma.hbm_to_vmem [thread:$0]  %s3, 4096, %s201, [#allocation9], 64, 64, 4
        $region24: #{tpu_custom_call.1} parent=11 // pred_fallthru
          _
        // Predicated region
        $region25: #{tpu_custom_call.1} parent=11 // pred_check
          %p207 = pneg %p129
        $region26: #{tpu_custom_call.1} parent=11 // pred_check_branch
          %209 = sbr.rel (%p207) target = $region28
        $region27: #{tpu_custom_call.1} parent=11 // pred_region
          _
        $region28: #{tpu_custom_call.1} parent=11 // pred_fallthru
          _
      $region12: #{tpu_custom_call.1} parent=5 // pred_fallthru
        _
      %p210 = scmp.lt.s32.totalorder %s19, 2
      // Predicated region
      $region29: #{tpu_custom_call.1} parent=5 // pred_check
        %p211 = pneg %p210
      $region30: #{tpu_custom_call.1} parent=5 // pred_check_branch
        %213 = sbr.rel (%p211) target = $region32
      $region31: #{tpu_custom_call.1} parent=5 // pred_region
        // Predicated region
        $region33: #{tpu_custom_call.1} parent=31 // pred_check
          %p214 = pneg %p39
        $region34: #{tpu_custom_call.1} parent=31 // pred_check_branch
          %216 = sbr.rel (%p214) target = $region36
        $region35: #{tpu_custom_call.1} parent=31 // pred_region
          %s217 = sand.u32 %s29, 1
          %s218 = scalar_lea.sflag [#allocation3], %s217
          %s219 = sand.u32 %s29, 1
          %s220 = smul.addr %s219, 128
          %s221 = scalar_lea.vmem [#allocation2], %s220
          %s222 = smul.u32 16, %s19
          %s224 = ssub.s32 2048, 2048
          %225 = vsyncadd %s218, %s224
          %s226 = smul.addr %s222, 128
          %s227 = scalar_lea.hbm %s0, %s226
          %s228 = sshll.u32 %s221, 4
          %s229 = int_to_ptr.vmem [resolvable:$true] %s228
          %234 = dma.hbm_to_vmem [thread:$0]  %s227, 2048, %s229, %s218, 128, 128, 8
        $region36: #{tpu_custom_call.1} parent=31 // pred_fallthru
          _
      $region32: #{tpu_custom_call.1} parent=5 // pred_fallthru
        _
      %p235 = scmp.le.s32.totalorder 1, %s19
      %p236 = scmp.lt.s32.totalorder %s19, 3
      %p237 = pnand %p235, %p236
      %p238 = pneg %p237
      // Predicated region
      $region37: #{tpu_custom_call.1} parent=5 // pred_check
        _
      $region38: #{tpu_custom_call.1} parent=5 // pred_check_branch
        %240 = sbr.rel (%p237) target = $region40
      $region39: #{tpu_custom_call.1} parent=5 // pred_region
        %s241 = ssub.s32 %s19, 1
        %s242 = sand.u32 %s32, 1
        %s243 = scalar_lea.sflag [#allocation3], %s242
        %s244 = sand.u32 %s32, 1
        %s245 = smul.addr %s244, 128
        %s246 = scalar_lea.vmem [#allocation2], %s245
        // Predicated region
        $region41: #{tpu_custom_call.1} parent=39 // pred_check
          %p247 = pneg %p45
        $region42: #{tpu_custom_call.1} parent=39 // pred_check_branch
          %249 = sbr.rel (%p247) target = $region44
        $region43: #{tpu_custom_call.1} parent=39 // pred_region
          %250 = dma.done %s243, 2048
        $region44: #{tpu_custom_call.1} parent=39 // pred_fallthru
          _
        // Predicated region
        $region45: #{tpu_custom_call.1} parent=39 // pred_check
          %p251 = pneg %p66
        $region46: #{tpu_custom_call.1} parent=39 // pred_check_branch
          %253 = sbr.rel (%p251) target = $region48
        $region47: #{tpu_custom_call.1} parent=39 // pred_region
          %254 = dma.done [#allocation6], 4096
        $region48: #{tpu_custom_call.1} parent=39 // pred_fallthru
          _
        // Predicated region
        $region49: #{tpu_custom_call.1} parent=39 // pred_check
          %p255 = pneg %p87
        $region50: #{tpu_custom_call.1} parent=39 // pred_check_branch
          %257 = sbr.rel (%p255) target = $region52
        $region51: #{tpu_custom_call.1} parent=39 // pred_region
          %258 = dma.done [#allocation6], 64
        $region52: #{tpu_custom_call.1} parent=39 // pred_fallthru
          _
        // Predicated region
        $region53: #{tpu_custom_call.1} parent=39 // pred_check
          %p259 = pneg %p108
        $region54: #{tpu_custom_call.1} parent=39 // pred_check_branch
          %261 = sbr.rel (%p259) target = $region56
        $region55: #{tpu_custom_call.1} parent=39 // pred_region
          %262 = dma.done [#allocation9], 4096
        $region56: #{tpu_custom_call.1} parent=39 // pred_fallthru
          _
        %s263 = sand.u32 %s32, 1
        %s264 = scalar_lea.sflag [#allocation3], %s263
        %s265 = sand.u32 %s32, 1
        %s266 = smul.addr %s265, 128
        %s267 = scalar_lea.vmem [#allocation2], %s266
        %p268 = pneg %p45
        %p269 = pneg %p42
        %p270 = pneg %p66
        %p271 = pneg %p63
        %p272 = pneg %p87
        %p273 = pneg %p84
        %p274 = pneg %p108
        %p275 = pneg %p105
        %p276 = pneg %p129
        %p277 = pneg %p126
        %p278 = pneg %p155
        %p279 = pneg %p152
        %s280 = sand.u32 %s142, 1
        %s281 = scalar_lea.sflag [#allocation4], %s280
        %s282 = sand.u32 %s142, 1
        %s283 = smul.addr %s282, 128
        %s284 = scalar_lea.vmem [#allocation10], %s283
        %s285 = smul.u32 16, %s24
        %s286 = smul.u32 16, %s24
        %v288 = vld [vmem:[%s246] sm:$0xff]
        %v289 = vld [vmem:[%s246 + $0x8] sm:$0xff]
        %v290 = vld [vmem:[%s246 + $0x10] sm:$0xff]
        %v291 = vld [vmem:[%s246 + $0x18] sm:$0xff]
        %v292 = vld [vmem:[%s246 + $0x20] sm:$0xff]
        %v293 = vld [vmem:[%s246 + $0x28] sm:$0xff]
        %v294 = vld [vmem:[%s246 + $0x30] sm:$0xff]
        %v295 = vld [vmem:[%s246 + $0x38] sm:$0xff]
        %v296 = vld [vmem:[%s246 + $0x40] sm:$0xff]
        %v297 = vld [vmem:[%s246 + $0x48] sm:$0xff]
        %v298 = vld [vmem:[%s246 + $0x50] sm:$0xff]
        %v299 = vld [vmem:[%s246 + $0x58] sm:$0xff]
        %v300 = vld [vmem:[%s246 + $0x60] sm:$0xff]
        %v301 = vld [vmem:[%s246 + $0x68] sm:$0xff]
        %v302 = vld [vmem:[%s246 + $0x70] sm:$0xff]
        %v303 = vld [vmem:[%s246 + $0x78] sm:$0xff]
        %v304 = vpack.c.bf16 %v289, %v288
        %v305 = vpack.c.bf16 %v291, %v290
        %v306 = vpack.c.bf16 %v293, %v292
        %v307 = vpack.c.bf16 %v295, %v294
        %v308 = vpack.c.bf16 %v297, %v296
        %v309 = vpack.c.bf16 %v299, %v298
        %v310 = vpack.c.bf16 %v301, %v300
        %v311 = vpack.c.bf16 %v303, %v302
        %v312 = vld [vmem:[#allocation5] sm:$0xff]
        %v313 = vld [vmem:[#allocation5 + $0x8] sm:$0xff]
        %v314 = vld [vmem:[#allocation5 + $0x10] sm:$0xff]
        %v315 = vld [vmem:[#allocation5 + $0x18] sm:$0xff]
        %v316 = vld [vmem:[#allocation5 + $0x20] sm:$0xff]
        %v317 = vld [vmem:[#allocation5 + $0x28] sm:$0xff]
        %v318 = vld [vmem:[#allocation5 + $0x30] sm:$0xff]
        %v319 = vld [vmem:[#allocation5 + $0x38] sm:$0xff]
        %v320 = vld [vmem:[#allocation5 + $0x40] sm:$0xff]
        %v321 = vld [vmem:[#allocation5 + $0x48] sm:$0xff]
        %v322 = vld [vmem:[#allocation5 + $0x50] sm:$0xff]
        %v323 = vld [vmem:[#allocation5 + $0x58] sm:$0xff]
        %v324 = vld [vmem:[#allocation5 + $0x60] sm:$0xff]
        %v325 = vld [vmem:[#allocation5 + $0x68] sm:$0xff]
        %v326 = vld [vmem:[#allocation5 + $0x70] sm:$0xff]
        %v327 = vld [vmem:[#allocation5 + $0x78] sm:$0xff]
        %v328 = vld [vmem:[#allocation5 + $0x80] sm:$0xff]
        %v329 = vld [vmem:[#allocation5 + $0x88] sm:$0xff]
        %v330 = vld [vmem:[#allocation5 + $0x90] sm:$0xff]
        %v331 = vld [vmem:[#allocation5 + $0x98] sm:$0xff]
        %v332 = vld [vmem:[#allocation5 + $0xa0] sm:$0xff]
        %v333 = vld [vmem:[#allocation5 + $0xa8] sm:$0xff]
        %v334 = vld [vmem:[#allocation5 + $0xb0] sm:$0xff]
        %v335 = vld [vmem:[#allocation5 + $0xb8] sm:$0xff]
        %v336 = vld [vmem:[#allocation5 + $0xc0] sm:$0xff]
        %v337 = vld [vmem:[#allocation5 + $0xc8] sm:$0xff]
        %v338 = vld [vmem:[#allocation5 + $0xd0] sm:$0xff]
        %v339 = vld [vmem:[#allocation5 + $0xd8] sm:$0xff]
        %v340 = vld [vmem:[#allocation5 + $0xe0] sm:$0xff]
        %v341 = vld [vmem:[#allocation5 + $0xe8] sm:$0xff]
        %v342 = vld [vmem:[#allocation5 + $0xf0] sm:$0xff]
        %v343 = vld [vmem:[#allocation5 + $0xf8] sm:$0xff]
        %v344 = vld [vmem:[#allocation7] sm:$0xf]
        %v346 = vlaneseq
        %v347 = vshrl.u32 %v346, 7
        %v348 = vsub.s32 0, %v347
        %v349 = vrot.slane %v344, %v348
        %v350 = vlaneseq
        %v351 = vshrl.u32 %v350, 7
        %v352 = vsub.s32 1, %v351
        %v353 = vrot.slane %v344, %v352
        %v354 = vlaneseq
        %v355 = vshrl.u32 %v354, 7
        %v356 = vsub.s32 2, %v355
        %v357 = vrot.slane %v344, %v356
        %v358 = vlaneseq
        %v359 = vshrl.u32 %v358, 7
        %v360 = vsub.s32 3, %v359
        %v361 = vrot.slane %v344, %v360
        %v398 = vunpack.c.l.b16 %v312
        %v399 = vunpack.c.h.b16 %v312
        %v400 = vunpack.c.l.b16 %v313
        %v401 = vunpack.c.h.b16 %v313
        %v402 = vunpack.c.l.b16 %v314
        %v403 = vunpack.c.h.b16 %v314
        %v404 = vunpack.c.l.b16 %v315
        %v405 = vunpack.c.h.b16 %v315
        %v406 = vunpack.c.l.b16 %v316
        %v407 = vunpack.c.h.b16 %v316
        %v408 = vunpack.c.l.b16 %v317
        %v409 = vunpack.c.h.b16 %v317
        %v410 = vunpack.c.l.b16 %v318
        %v411 = vunpack.c.h.b16 %v318
        %v412 = vunpack.c.l.b16 %v319
        %v413 = vunpack.c.h.b16 %v319
        %v414 = vunpack.c.l.b16 %v320
        %v415 = vunpack.c.h.b16 %v320
        %v416 = vunpack.c.l.b16 %v321
        %v417 = vunpack.c.h.b16 %v321
        %v418 = vunpack.c.l.b16 %v322
        %v419 = vunpack.c.h.b16 %v322
        %v420 = vunpack.c.l.b16 %v323
        %v421 = vunpack.c.h.b16 %v323
        %v422 = vunpack.c.l.b16 %v324
        %v423 = vunpack.c.h.b16 %v324
        %v424 = vunpack.c.l.b16 %v325
        %v425 = vunpack.c.h.b16 %v325
        %v426 = vunpack.c.l.b16 %v326
        %v427 = vunpack.c.h.b16 %v326
        %v428 = vunpack.c.l.b16 %v327
        %v429 = vunpack.c.h.b16 %v327
        %v430 = vunpack.c.l.b16 %v328
        %v431 = vunpack.c.h.b16 %v328
        %v432 = vunpack.c.l.b16 %v329
        %v433 = vunpack.c.h.b16 %v329
        %v434 = vunpack.c.l.b16 %v330
        %v435 = vunpack.c.h.b16 %v330
        %v436 = vunpack.c.l.b16 %v331
        %v437 = vunpack.c.h.b16 %v331
        %v438 = vunpack.c.l.b16 %v332
        %v439 = vunpack.c.h.b16 %v332
        %v440 = vunpack.c.l.b16 %v333
        %v441 = vunpack.c.h.b16 %v333
        %v442 = vunpack.c.l.b16 %v334
        %v443 = vunpack.c.h.b16 %v334
        %v444 = vunpack.c.l.b16 %v335
        %v445 = vunpack.c.h.b16 %v335
        %v446 = vunpack.c.l.b16 %v336
        %v447 = vunpack.c.h.b16 %v336
        %v448 = vunpack.c.l.b16 %v337
        %v449 = vunpack.c.h.b16 %v337
        %v450 = vunpack.c.l.b16 %v338
        %v451 = vunpack.c.h.b16 %v338
        %v452 = vunpack.c.l.b16 %v339
        %v453 = vunpack.c.h.b16 %v339
        %v454 = vunpack.c.l.b16 %v340
        %v455 = vunpack.c.h.b16 %v340
        %v456 = vunpack.c.l.b16 %v341
        %v457 = vunpack.c.h.b16 %v341
        %v458 = vunpack.c.l.b16 %v342
        %v459 = vunpack.c.h.b16 %v342
        %v460 = vunpack.c.l.b16 %v343
        %v461 = vunpack.c.h.b16 %v343
        %v462 = vpack.c.b16 %v402, %v398
        %v463 = vpack.c.b16 %v403, %v399
        %v464 = vpack.c.b16 %v404, %v400
        %v465 = vpack.c.b16 %v405, %v401
        %v466 = vpack.c.b16 %v410, %v406
        %v467 = vpack.c.b16 %v411, %v407
        %v468 = vpack.c.b16 %v412, %v408
        %v469 = vpack.c.b16 %v413, %v409
        %v470 = vpack.c.b16 %v418, %v414
        %v471 = vpack.c.b16 %v419, %v415
        %v472 = vpack.c.b16 %v420, %v416
        %v473 = vpack.c.b16 %v421, %v417
        %v474 = vpack.c.b16 %v426, %v422
        %v475 = vpack.c.b16 %v427, %v423
        %v476 = vpack.c.b16 %v428, %v424
        %v477 = vpack.c.b16 %v429, %v425
        %v478 = vpack.c.b16 %v434, %v430
        %v479 = vpack.c.b16 %v435, %v431
        %v480 = vpack.c.b16 %v436, %v432
        %v481 = vpack.c.b16 %v437, %v433
        %v482 = vpack.c.b16 %v442, %v438
        %v483 = vpack.c.b16 %v443, %v439
        %v484 = vpack.c.b16 %v444, %v440
        %v485 = vpack.c.b16 %v445, %v441
        %v486 = vpack.c.b16 %v450, %v446
        %v487 = vpack.c.b16 %v451, %v447
        %v488 = vpack.c.b16 %v452, %v448
        %v489 = vpack.c.b16 %v453, %v449
        %v490 = vpack.c.b16 %v458, %v454
        %v491 = vpack.c.b16 %v459, %v455
        %v492 = vpack.c.b16 %v460, %v456
        %v493 = vpack.c.b16 %v461, %v457
        %526 = vmatprep.subr.bf16.mxu0 %v491
        %527 = vmatpush1.bf16.msra.mxu0 %v490
        %528 = vmatprep.subr.bf16.mxu0 %v487
        %529 = vmatpush1.bf16.msra.mxu0 %v486
        %530 = vmatprep.subr.bf16.mxu0 %v483
        %531 = vmatpush1.bf16.msra.mxu0 %v482
        %532 = vmatprep.subr.bf16.mxu0 %v479
        %533 = vmatpush1.bf16.msra.mxu0 %v478
        %534 = vmatprep.subr.bf16.mxu0 %v475
        %535 = vmatpush1.bf16.msra.mxu0 %v474
        %536 = vmatprep.subr.bf16.mxu0 %v471
        %537 = vmatpush1.bf16.msra.mxu0 %v470
        %538 = vmatprep.subr.bf16.mxu0 %v467
        %539 = vmatpush1.bf16.msra.mxu0 %v466
        %540 = vmatprep.subr.bf16.mxu0 %v463
        %541 = vmatpush1.bf16.msra.mxu0 %v462
        %542 = vmatprep.subr.bf16.mxu0 0
        %543 = vmatpush2.bf16.msra.mxu0 0
        %544 = vmatprep.subr.bf16.mxu0 0
        %545 = vmatpush2.bf16.msra.mxu0 0
        %546 = vmatprep.subr.bf16.mxu0 0
        %547 = vmatpush2.bf16.msra.mxu0 0
        %548 = vmatprep.subr.bf16.mxu0 0
        %549 = vmatpush2.bf16.msra.mxu0 0
        %550 = vmatprep.subr.bf16.mxu0 0
        %551 = vmatpush2.bf16.msra.mxu0 0
        %552 = vmatprep.subr.bf16.mxu0 0
        %553 = vmatpush2.bf16.msra.mxu0 0
        %554 = vmatprep.subr.bf16.mxu0 0
        %555 = vmatpush2.bf16.msra.mxu0 0
        %556 = vmatprep.subr.bf16.mxu0 0
        %557 = vmatpush2.bf16.msra.mxu0 0
        %558 = vmatprep.mubr.bf16.mxu0 0
        %559 = vmatmul.mubr.bf16.gmra.mxu0 %v304
        %v560 = vpop.f32.mrf.mxu0
        %v561 = vadd.f32 %v349, %v560
        %v562 = vpop.f32.mrf.mxu0
        %v563 = vadd.f32 %v353, %v562
        %v564 = vpop.f32.mrf.mxu0
        %v565 = vadd.f32 %v349, %v564
        %v566 = vpop.f32.mrf.mxu0
        %v567 = vadd.f32 %v353, %v566
        %568 = vmatprep.mubr.bf16.mxu0 0
        %569 = vmatmul.mubr.bf16.gmra.mxu0 %v305
        %v570 = vpop.f32.mrf.mxu0
        %v571 = vadd.f32 %v349, %v570
        %v572 = vpop.f32.mrf.mxu0
        %v573 = vadd.f32 %v353, %v572
        %v574 = vpop.f32.mrf.mxu0
        %v575 = vadd.f32 %v349, %v574
        %v576 = vpop.f32.mrf.mxu0
        %v577 = vadd.f32 %v353, %v576
        %578 = vmatprep.mubr.bf16.mxu0 0
        %579 = vmatmul.mubr.bf16.gmra.mxu0 %v306
        %v580 = vpop.f32.mrf.mxu0
        %v581 = vadd.f32 %v349, %v580
        %v582 = vpop.f32.mrf.mxu0
        %v583 = vadd.f32 %v353, %v582
        %v584 = vpop.f32.mrf.mxu0
        %v585 = vadd.f32 %v349, %v584
        %v586 = vpop.f32.mrf.mxu0
        %v587 = vadd.f32 %v353, %v586
        %588 = vmatprep.mubr.bf16.mxu0 0
        %589 = vmatmul.mubr.bf16.gmra.mxu0 %v307
        %v590 = vpop.f32.mrf.mxu0
        %v591 = vadd.f32 %v349, %v590
        %v592 = vpop.f32.mrf.mxu0
        %v593 = vadd.f32 %v353, %v592
        %v594 = vpop.f32.mrf.mxu0
        %v595 = vadd.f32 %v349, %v594
        %v596 = vpop.f32.mrf.mxu0
        %v597 = vadd.f32 %v353, %v596
        %598 = vmatprep.mubr.bf16.mxu0 0
        %599 = vmatmul.mubr.bf16.gmra.mxu0 %v308
        %v600 = vpop.f32.mrf.mxu0
        %v601 = vadd.f32 %v349, %v600
        %v602 = vpop.f32.mrf.mxu0
        %v603 = vadd.f32 %v353, %v602
        %v604 = vpop.f32.mrf.mxu0
        %v605 = vadd.f32 %v349, %v604
        %v606 = vpop.f32.mrf.mxu0
        %v607 = vadd.f32 %v353, %v606
        %608 = vmatprep.mubr.bf16.mxu0 0
        %609 = vmatmul.mubr.bf16.gmra.mxu0 %v309
        %v610 = vpop.f32.mrf.mxu0
        %v611 = vadd.f32 %v349, %v610
        %v612 = vpop.f32.mrf.mxu0
        %v613 = vadd.f32 %v353, %v612
        %v614 = vpop.f32.mrf.mxu0
        %v615 = vadd.f32 %v349, %v614
        %v616 = vpop.f32.mrf.mxu0
        %v617 = vadd.f32 %v353, %v616
        %618 = vmatprep.mubr.bf16.mxu0 0
        %619 = vmatmul.mubr.bf16.gmra.mxu0 %v310
        %v620 = vpop.f32.mrf.mxu0
        %v621 = vadd.f32 %v349, %v620
        %v622 = vpop.f32.mrf.mxu0
        %v623 = vadd.f32 %v353, %v622
        %v624 = vpop.f32.mrf.mxu0
        %v625 = vadd.f32 %v349, %v624
        %v626 = vpop.f32.mrf.mxu0
        %v627 = vadd.f32 %v353, %v626
        %628 = vmatprep.mubr.bf16.mxu0 0
        %629 = vmatmul.mubr.bf16.gmra.mxu0 %v311
        %v630 = vpop.f32.mrf.mxu0
        %v631 = vadd.f32 %v349, %v630
        %v632 = vpop.f32.mrf.mxu0
        %v633 = vadd.f32 %v353, %v632
        %v634 = vpop.f32.mrf.mxu0
        %v635 = vadd.f32 %v349, %v634
        %v636 = vpop.f32.mrf.mxu0
        %v637 = vadd.f32 %v353, %v636
        %638 = vdwg.mxu0
        %639 = vmatprep.subr.bf16.mxu0 %v493
        %640 = vmatpush1.bf16.msra.mxu0 %v492
        %641 = vmatprep.subr.bf16.mxu0 %v489
        %642 = vmatpush1.bf16.msra.mxu0 %v488
        %643 = vmatprep.subr.bf16.mxu0 %v485
        %644 = vmatpush1.bf16.msra.mxu0 %v484
        %645 = vmatprep.subr.bf16.mxu0 %v481
        %646 = vmatpush1.bf16.msra.mxu0 %v480
        %647 = vmatprep.subr.bf16.mxu0 %v477
        %648 = vmatpush1.bf16.msra.mxu0 %v476
        %649 = vmatprep.subr.bf16.mxu0 %v473
        %650 = vmatpush1.bf16.msra.mxu0 %v472
        %651 = vmatprep.subr.bf16.mxu0 %v469
        %652 = vmatpush1.bf16.msra.mxu0 %v468
        %653 = vmatprep.subr.bf16.mxu0 %v465
        %654 = vmatpush1.bf16.msra.mxu0 %v464
        %655 = vmatprep.subr.bf16.mxu0 0
        %656 = vmatpush2.bf16.msra.mxu0 0
        %657 = vmatprep.subr.bf16.mxu0 0
        %658 = vmatpush2.bf16.msra.mxu0 0
        %659 = vmatprep.subr.bf16.mxu0 0
        %660 = vmatpush2.bf16.msra.mxu0 0
        %661 = vmatprep.subr.bf16.mxu0 0
        %662 = vmatpush2.bf16.msra.mxu0 0
        %663 = vmatprep.subr.bf16.mxu0 0
        %664 = vmatpush2.bf16.msra.mxu0 0
        %665 = vmatprep.subr.bf16.mxu0 0
        %666 = vmatpush2.bf16.msra.mxu0 0
        %667 = vmatprep.subr.bf16.mxu0 0
        %668 = vmatpush2.bf16.msra.mxu0 0
        %669 = vmatprep.subr.bf16.mxu0 0
        %670 = vmatpush2.bf16.msra.mxu0 0
        %671 = vmatprep.mubr.bf16.mxu0 0
        %672 = vmatmul.mubr.bf16.gmra.mxu0 %v304
        %v673 = vpop.f32.mrf.mxu0
        %v674 = vadd.f32 %v357, %v673
        %v675 = vpop.f32.mrf.mxu0
        %v676 = vadd.f32 %v361, %v675
        %v677 = vpop.f32.mrf.mxu0
        %v678 = vadd.f32 %v357, %v677
        %v679 = vpop.f32.mrf.mxu0
        %v680 = vadd.f32 %v361, %v679
        %681 = vmatprep.mubr.bf16.mxu0 0
        %682 = vmatmul.mubr.bf16.gmra.mxu0 %v305
        %v683 = vpop.f32.mrf.mxu0
        %v684 = vadd.f32 %v357, %v683
        %v685 = vpop.f32.mrf.mxu0
        %v686 = vadd.f32 %v361, %v685
        %v687 = vpop.f32.mrf.mxu0
        %v688 = vadd.f32 %v357, %v687
        %v689 = vpop.f32.mrf.mxu0
        %v690 = vadd.f32 %v361, %v689
        %691 = vmatprep.mubr.bf16.mxu0 0
        %692 = vmatmul.mubr.bf16.gmra.mxu0 %v306
        %v693 = vpop.f32.mrf.mxu0
        %v694 = vadd.f32 %v357, %v693
        %v695 = vpop.f32.mrf.mxu0
        %v696 = vadd.f32 %v361, %v695
        %v697 = vpop.f32.mrf.mxu0
        %v698 = vadd.f32 %v357, %v697
        %v699 = vpop.f32.mrf.mxu0
        %v700 = vadd.f32 %v361, %v699
        %701 = vmatprep.mubr.bf16.mxu0 0
        %702 = vmatmul.mubr.bf16.gmra.mxu0 %v307
        %v703 = vpop.f32.mrf.mxu0
        %v704 = vadd.f32 %v357, %v703
        %v705 = vpop.f32.mrf.mxu0
        %v706 = vadd.f32 %v361, %v705
        %v707 = vpop.f32.mrf.mxu0
        %v708 = vadd.f32 %v357, %v707
        %v709 = vpop.f32.mrf.mxu0
        %v710 = vadd.f32 %v361, %v709
        %711 = vmatprep.mubr.bf16.mxu0 0
        %712 = vmatmul.mubr.bf16.gmra.mxu0 %v308
        %v713 = vpop.f32.mrf.mxu0
        %v714 = vadd.f32 %v357, %v713
        %v715 = vpop.f32.mrf.mxu0
        %v716 = vadd.f32 %v361, %v715
        %v717 = vpop.f32.mrf.mxu0
        %v718 = vadd.f32 %v357, %v717
        %v719 = vpop.f32.mrf.mxu0
        %v720 = vadd.f32 %v361, %v719
        %721 = vmatprep.mubr.bf16.mxu0 0
        %722 = vmatmul.mubr.bf16.gmra.mxu0 %v309
        %v723 = vpop.f32.mrf.mxu0
        %v724 = vadd.f32 %v357, %v723
        %v725 = vpop.f32.mrf.mxu0
        %v726 = vadd.f32 %v361, %v725
        %v727 = vpop.f32.mrf.mxu0
        %v728 = vadd.f32 %v357, %v727
        %v729 = vpop.f32.mrf.mxu0
        %v730 = vadd.f32 %v361, %v729
        %731 = vmatprep.mubr.bf16.mxu0 0
        %732 = vmatmul.mubr.bf16.gmra.mxu0 %v310
        %v733 = vpop.f32.mrf.mxu0
        %v734 = vadd.f32 %v357, %v733
        %v735 = vpop.f32.mrf.mxu0
        %v736 = vadd.f32 %v361, %v735
        %v737 = vpop.f32.mrf.mxu0
        %v738 = vadd.f32 %v357, %v737
        %v739 = vpop.f32.mrf.mxu0
        %v740 = vadd.f32 %v361, %v739
        %741 = vmatprep.mubr.bf16.mxu0 0
        %742 = vmatmul.mubr.bf16.gmra.mxu0 %v311
        %v743 = vpop.f32.mrf.mxu0
        %v744 = vadd.f32 %v357, %v743
        %v745 = vpop.f32.mrf.mxu0
        %v746 = vadd.f32 %v361, %v745
        %v747 = vpop.f32.mrf.mxu0
        %v748 = vadd.f32 %v357, %v747
        %v749 = vpop.f32.mrf.mxu0
        %v750 = vadd.f32 %v361, %v749
        %751 = vdwg.mxu0
        %v752 = vmax.f32 %v561, 0.0
        %v753 = vmax.f32 %v563, 0.0
        %v754 = vmax.f32 %v674, 0.0
        %v755 = vmax.f32 %v676, 0.0
        %v756 = vmax.f32 %v565, 0.0
        %v757 = vmax.f32 %v567, 0.0
        %v758 = vmax.f32 %v678, 0.0
        %v759 = vmax.f32 %v680, 0.0
        %v760 = vmax.f32 %v571, 0.0
        %v761 = vmax.f32 %v573, 0.0
        %v762 = vmax.f32 %v684, 0.0
        %v763 = vmax.f32 %v686, 0.0
        %v764 = vmax.f32 %v575, 0.0
        %v765 = vmax.f32 %v577, 0.0
        %v766 = vmax.f32 %v688, 0.0
        %v767 = vmax.f32 %v690, 0.0
        %v768 = vmax.f32 %v581, 0.0
        %v769 = vmax.f32 %v583, 0.0
        %v770 = vmax.f32 %v694, 0.0
        %v771 = vmax.f32 %v696, 0.0
        %v772 = vmax.f32 %v585, 0.0
        %v773 = vmax.f32 %v587, 0.0
        %v774 = vmax.f32 %v698, 0.0
        %v775 = vmax.f32 %v700, 0.0
        %v776 = vmax.f32 %v591, 0.0
        %v777 = vmax.f32 %v593, 0.0
        %v778 = vmax.f32 %v704, 0.0
        %v779 = vmax.f32 %v706, 0.0
        %v780 = vmax.f32 %v595, 0.0
        %v781 = vmax.f32 %v597, 0.0
        %v782 = vmax.f32 %v708, 0.0
        %v783 = vmax.f32 %v710, 0.0
        %v784 = vmax.f32 %v601, 0.0
        %v785 = vmax.f32 %v603, 0.0
        %v786 = vmax.f32 %v714, 0.0
        %v787 = vmax.f32 %v716, 0.0
        %v788 = vmax.f32 %v605, 0.0
        %v789 = vmax.f32 %v607, 0.0
        %v790 = vmax.f32 %v718, 0.0
        %v791 = vmax.f32 %v720, 0.0
        %v792 = vmax.f32 %v611, 0.0
        %v793 = vmax.f32 %v613, 0.0
        %v794 = vmax.f32 %v724, 0.0
        %v795 = vmax.f32 %v726, 0.0
        %v796 = vmax.f32 %v615, 0.0
        %v797 = vmax.f32 %v617, 0.0
        %v798 = vmax.f32 %v728, 0.0
        %v799 = vmax.f32 %v730, 0.0
        %v800 = vmax.f32 %v621, 0.0
        %v801 = vmax.f32 %v623, 0.0
        %v802 = vmax.f32 %v734, 0.0
        %v803 = vmax.f32 %v736, 0.0
        %v804 = vmax.f32 %v625, 0.0
        %v805 = vmax.f32 %v627, 0.0
        %v806 = vmax.f32 %v738, 0.0
        %v807 = vmax.f32 %v740, 0.0
        %v808 = vmax.f32 %v631, 0.0
        %v809 = vmax.f32 %v633, 0.0
        %v810 = vmax.f32 %v744, 0.0
        %v811 = vmax.f32 %v746, 0.0
        %v812 = vmax.f32 %v635, 0.0
        %v813 = vmax.f32 %v637, 0.0
        %v814 = vmax.f32 %v748, 0.0
        %v815 = vmax.f32 %v750, 0.0
        %v816 = vpack.c.bf16 %v756, %v752
        %v817 = vpack.c.bf16 %v757, %v753
        %v818 = vpack.c.bf16 %v758, %v754
        %v819 = vpack.c.bf16 %v759, %v755
        %v820 = vpack.c.bf16 %v764, %v760
        %v821 = vpack.c.bf16 %v765, %v761
        %v822 = vpack.c.bf16 %v766, %v762
        %v823 = vpack.c.bf16 %v767, %v763
        %v824 = vpack.c.bf16 %v772, %v768
        %v825 = vpack.c.bf16 %v773, %v769
        %v826 = vpack.c.bf16 %v774, %v770
        %v827 = vpack.c.bf16 %v775, %v771
        %v828 = vpack.c.bf16 %v780, %v776
        %v829 = vpack.c.bf16 %v781, %v777
        %v830 = vpack.c.bf16 %v782, %v778
        %v831 = vpack.c.bf16 %v783, %v779
        %v832 = vpack.c.bf16 %v788, %v784
        %v833 = vpack.c.bf16 %v789, %v785
        %v834 = vpack.c.bf16 %v790, %v786
        %v835 = vpack.c.bf16 %v791, %v787
        %v836 = vpack.c.bf16 %v796, %v792
        %v837 = vpack.c.bf16 %v797, %v793
        %v838 = vpack.c.bf16 %v798, %v794
        %v839 = vpack.c.bf16 %v799, %v795
        %v840 = vpack.c.bf16 %v804, %v800
        %v841 = vpack.c.bf16 %v805, %v801
        %v842 = vpack.c.bf16 %v806, %v802
        %v843 = vpack.c.bf16 %v807, %v803
        %v844 = vpack.c.bf16 %v812, %v808
        %v845 = vpack.c.bf16 %v813, %v809
        %v846 = vpack.c.bf16 %v814, %v810
        %v847 = vpack.c.bf16 %v815, %v811
        %v848 = vld [vmem:[#allocation8] sm:$0xf]
        %v849 = vld [vmem:[#allocation8 + $0x4] sm:$0xf]
        %v850 = vld [vmem:[#allocation8 + $0x8] sm:$0xf]
        %v851 = vld [vmem:[#allocation8 + $0xc] sm:$0xf]
        %v852 = vld [vmem:[#allocation8 + $0x10] sm:$0xf]
        %v853 = vld [vmem:[#allocation8 + $0x14] sm:$0xf]
        %v854 = vld [vmem:[#allocation8 + $0x18] sm:$0xf]
        %v855 = vld [vmem:[#allocation8 + $0x1c] sm:$0xf]
        %v856 = vld [vmem:[#allocation8 + $0x20] sm:$0xf]
        %v857 = vld [vmem:[#allocation8 + $0x24] sm:$0xf]
        %v858 = vld [vmem:[#allocation8 + $0x28] sm:$0xf]
        %v859 = vld [vmem:[#allocation8 + $0x2c] sm:$0xf]
        %v860 = vld [vmem:[#allocation8 + $0x30] sm:$0xf]
        %v861 = vld [vmem:[#allocation8 + $0x34] sm:$0xf]
        %v862 = vld [vmem:[#allocation8 + $0x38] sm:$0xf]
        %v863 = vld [vmem:[#allocation8 + $0x3c] sm:$0xf]
        %v864 = vld [vmem:[#allocation8 + $0x40] sm:$0xf]
        %v865 = vld [vmem:[#allocation8 + $0x44] sm:$0xf]
        %v866 = vld [vmem:[#allocation8 + $0x48] sm:$0xf]
        %v867 = vld [vmem:[#allocation8 + $0x4c] sm:$0xf]
        %v868 = vld [vmem:[#allocation8 + $0x50] sm:$0xf]
        %v869 = vld [vmem:[#allocation8 + $0x54] sm:$0xf]
        %v870 = vld [vmem:[#allocation8 + $0x58] sm:$0xf]
        %v871 = vld [vmem:[#allocation8 + $0x5c] sm:$0xf]
        %v872 = vld [vmem:[#allocation8 + $0x60] sm:$0xf]
        %v873 = vld [vmem:[#allocation8 + $0x64] sm:$0xf]
        %v874 = vld [vmem:[#allocation8 + $0x68] sm:$0xf]
        %v875 = vld [vmem:[#allocation8 + $0x6c] sm:$0xf]
        %v876 = vld [vmem:[#allocation8 + $0x70] sm:$0xf]
        %v877 = vld [vmem:[#allocation8 + $0x74] sm:$0xf]
        %v878 = vld [vmem:[#allocation8 + $0x78] sm:$0xf]
        %v879 = vld [vmem:[#allocation8 + $0x7c] sm:$0xf]
        %v880 = vld [vmem:[#allocation8 + $0x80] sm:$0xf]
        %v881 = vld [vmem:[#allocation8 + $0x84] sm:$0xf]
        %v882 = vld [vmem:[#allocation8 + $0x88] sm:$0xf]
        %v883 = vld [vmem:[#allocation8 + $0x8c] sm:$0xf]
        %v884 = vld [vmem:[#allocation8 + $0x90] sm:$0xf]
        %v885 = vld [vmem:[#allocation8 + $0x94] sm:$0xf]
        %v886 = vld [vmem:[#allocation8 + $0x98] sm:$0xf]
        %v887 = vld [vmem:[#allocation8 + $0x9c] sm:$0xf]
        %v888 = vld [vmem:[#allocation8 + $0xa0] sm:$0xf]
        %v889 = vld [vmem:[#allocation8 + $0xa4] sm:$0xf]
        %v890 = vld [vmem:[#allocation8 + $0xa8] sm:$0xf]
        %v891 = vld [vmem:[#allocation8 + $0xac] sm:$0xf]
        %v892 = vld [vmem:[#allocation8 + $0xb0] sm:$0xf]
        %v893 = vld [vmem:[#allocation8 + $0xb4] sm:$0xf]
        %v894 = vld [vmem:[#allocation8 + $0xb8] sm:$0xf]
        %v895 = vld [vmem:[#allocation8 + $0xbc] sm:$0xf]
        %v896 = vld [vmem:[#allocation8 + $0xc0] sm:$0xf]
        %v897 = vld [vmem:[#allocation8 + $0xc4] sm:$0xf]
        %v898 = vld [vmem:[#allocation8 + $0xc8] sm:$0xf]
        %v899 = vld [vmem:[#allocation8 + $0xcc] sm:$0xf]
        %v900 = vld [vmem:[#allocation8 + $0xd0] sm:$0xf]
        %v901 = vld [vmem:[#allocation8 + $0xd4] sm:$0xf]
        %v902 = vld [vmem:[#allocation8 + $0xd8] sm:$0xf]
        %v903 = vld [vmem:[#allocation8 + $0xdc] sm:$0xf]
        %v904 = vld [vmem:[#allocation8 + $0xe0] sm:$0xf]
        %v905 = vld [vmem:[#allocation8 + $0xe4] sm:$0xf]
        %v906 = vld [vmem:[#allocation8 + $0xe8] sm:$0xf]
        %v907 = vld [vmem:[#allocation8 + $0xec] sm:$0xf]
        %v908 = vld [vmem:[#allocation8 + $0xf0] sm:$0xf]
        %v909 = vld [vmem:[#allocation8 + $0xf4] sm:$0xf]
        %v910 = vld [vmem:[#allocation8 + $0xf8] sm:$0xf]
        %v911 = vld [vmem:[#allocation8 + $0xfc] sm:$0xf]
        %v912 = vld [vmem:[%s4] sm:$0x1]
        %v914 = vlaneseq
        %v915 = vshrl.u32 %v914, 7
        %v916 = vsub.s32 0, %v915
        %v917 = vrot.slane %v912, %v916
        %v983 = vunpack.c.l.b16 %v848
        %v984 = vunpack.c.l.b16 %v849
        %v985 = vunpack.c.l.b16 %v850
        %v986 = vunpack.c.l.b16 %v851
        %v987 = vunpack.c.l.b16 %v852
        %v988 = vunpack.c.l.b16 %v853
        %v989 = vunpack.c.l.b16 %v854
        %v990 = vunpack.c.l.b16 %v855
        %v991 = vunpack.c.l.b16 %v856
        %v992 = vunpack.c.l.b16 %v857
        %v993 = vunpack.c.l.b16 %v858
        %v994 = vunpack.c.l.b16 %v859
        %v995 = vunpack.c.l.b16 %v860
        %v996 = vunpack.c.l.b16 %v861
        %v997 = vunpack.c.l.b16 %v862
        %v998 = vunpack.c.l.b16 %v863
        %v999 = vunpack.c.l.b16 %v864
        %v1000 = vunpack.c.l.b16 %v865
        %v1001 = vunpack.c.l.b16 %v866
        %v1002 = vunpack.c.l.b16 %v867
        %v1003 = vunpack.c.l.b16 %v868
        %v1004 = vunpack.c.l.b16 %v869
        %v1005 = vunpack.c.l.b16 %v870
        %v1006 = vunpack.c.l.b16 %v871
        %v1007 = vunpack.c.l.b16 %v872
        %v1008 = vunpack.c.l.b16 %v873
        %v1009 = vunpack.c.l.b16 %v874
        %v1010 = vunpack.c.l.b16 %v875
        %v1011 = vunpack.c.l.b16 %v876
        %v1012 = vunpack.c.l.b16 %v877
        %v1013 = vunpack.c.l.b16 %v878
        %v1014 = vunpack.c.l.b16 %v879
        %v1015 = vunpack.c.l.b16 %v880
        %v1016 = vunpack.c.l.b16 %v881
        %v1017 = vunpack.c.l.b16 %v882
        %v1018 = vunpack.c.l.b16 %v883
        %v1019 = vunpack.c.l.b16 %v884
        %v1020 = vunpack.c.l.b16 %v885
        %v1021 = vunpack.c.l.b16 %v886
        %v1022 = vunpack.c.l.b16 %v887
        %v1023 = vunpack.c.l.b16 %v888
        %v1024 = vunpack.c.l.b16 %v889
        %v1025 = vunpack.c.l.b16 %v890
        %v1026 = vunpack.c.l.b16 %v891
        %v1027 = vunpack.c.l.b16 %v892
        %v1028 = vunpack.c.l.b16 %v893
        %v1029 = vunpack.c.l.b16 %v894
        %v1030 = vunpack.c.l.b16 %v895
        %v1031 = vunpack.c.l.b16 %v896
        %v1032 = vunpack.c.l.b16 %v897
        %v1033 = vunpack.c.l.b16 %v898
        %v1034 = vunpack.c.l.b16 %v899
        %v1035 = vunpack.c.l.b16 %v900
        %v1036 = vunpack.c.l.b16 %v901
        %v1037 = vunpack.c.l.b16 %v902
        %v1038 = vunpack.c.l.b16 %v903
        %v1039 = vunpack.c.l.b16 %v904
        %v1040 = vunpack.c.l.b16 %v905
        %v1041 = vunpack.c.l.b16 %v906
        %v1042 = vunpack.c.l.b16 %v907
        %v1043 = vunpack.c.l.b16 %v908
        %v1044 = vunpack.c.l.b16 %v909
        %v1045 = vunpack.c.l.b16 %v910
        %v1046 = vunpack.c.l.b16 %v911
        %v1047 = vpack.c.b16 %v984, %v983
        %v1048 = vpack.c.b16 %v986, %v985
        %v1049 = vpack.c.b16 %v988, %v987
        %v1050 = vpack.c.b16 %v990, %v989
        %v1051 = vpack.c.b16 %v992, %v991
        %v1052 = vpack.c.b16 %v994, %v993
        %v1053 = vpack.c.b16 %v996, %v995
        %v1054 = vpack.c.b16 %v998, %v997
        %v1055 = vpack.c.b16 %v1000, %v999
        %v1056 = vpack.c.b16 %v1002, %v1001
        %v1057 = vpack.c.b16 %v1004, %v1003
        %v1058 = vpack.c.b16 %v1006, %v1005
        %v1059 = vpack.c.b16 %v1008, %v1007
        %v1060 = vpack.c.b16 %v1010, %v1009
        %v1061 = vpack.c.b16 %v1012, %v1011
        %v1062 = vpack.c.b16 %v1014, %v1013
        %v1063 = vpack.c.b16 %v1016, %v1015
        %v1064 = vpack.c.b16 %v1018, %v1017
        %v1065 = vpack.c.b16 %v1020, %v1019
        %v1066 = vpack.c.b16 %v1022, %v1021
        %v1067 = vpack.c.b16 %v1024, %v1023
        %v1068 = vpack.c.b16 %v1026, %v1025
        %v1069 = vpack.c.b16 %v1028, %v1027
        %v1070 = vpack.c.b16 %v1030, %v1029
        %v1071 = vpack.c.b16 %v1032, %v1031
        %v1072 = vpack.c.b16 %v1034, %v1033
        %v1073 = vpack.c.b16 %v1036, %v1035
        %v1074 = vpack.c.b16 %v1038, %v1037
        %v1075 = vpack.c.b16 %v1040, %v1039
        %v1076 = vpack.c.b16 %v1042, %v1041
        %v1077 = vpack.c.b16 %v1044, %v1043
        %v1078 = vpack.c.b16 %v1046, %v1045
        %1111 = vmatprep.subr.bf16.mxu0 0
        %1112 = vmatpush1.bf16.msra.mxu0 %v1054
        %1113 = vmatprep.subr.bf16.mxu0 0
        %1114 = vmatpush1.bf16.msra.mxu0 %v1053
        %1115 = vmatprep.subr.bf16.mxu0 0
        %1116 = vmatpush1.bf16.msra.mxu0 %v1052
        %1117 = vmatprep.subr.bf16.mxu0 0
        %1118 = vmatpush1.bf16.msra.mxu0 %v1051
        %1119 = vmatprep.subr.bf16.mxu0 0
        %1120 = vmatpush1.bf16.msra.mxu0 %v1050
        %1121 = vmatprep.subr.bf16.mxu0 0
        %1122 = vmatpush1.bf16.msra.mxu0 %v1049
        %1123 = vmatprep.subr.bf16.mxu0 0
        %1124 = vmatpush1.bf16.msra.mxu0 %v1048
        %1125 = vmatprep.subr.bf16.mxu0 0
        %1126 = vmatpush1.bf16.msra.mxu0 %v1047
        %1127 = vmatprep.subr.bf16.mxu0 0
        %1128 = vmatpush2.bf16.msra.mxu0 %v1062
        %1129 = vmatprep.subr.bf16.mxu0 0
        %1130 = vmatpush2.bf16.msra.mxu0 %v1061
        %1131 = vmatprep.subr.bf16.mxu0 0
        %1132 = vmatpush2.bf16.msra.mxu0 %v1060
        %1133 = vmatprep.subr.bf16.mxu0 0
        %1134 = vmatpush2.bf16.msra.mxu0 %v1059
        %1135 = vmatprep.subr.bf16.mxu0 0
        %1136 = vmatpush2.bf16.msra.mxu0 %v1058
        %1137 = vmatprep.subr.bf16.mxu0 0
        %1138 = vmatpush2.bf16.msra.mxu0 %v1057
        %1139 = vmatprep.subr.bf16.mxu0 0
        %1140 = vmatpush2.bf16.msra.mxu0 %v1056
        %1141 = vmatprep.subr.bf16.mxu0 0
        %1142 = vmatpush2.bf16.msra.mxu0 %v1055
        %1143 = vmatprep.mubr.bf16.mxu0 %v817
        %1144 = vmatmul.mubr.bf16.gmra.mxu0 %v816
        %v1145 = vpop.f32.mrf.mxu0
        %v1146 = vadd.f32 %v917, %v1145
        %v1147 = vpop.f32.mrf.mxu0
        %v1148 = vpop.f32.mrf.mxu0
        %v1149 = vadd.f32 %v917, %v1148
        %v1150 = vpop.f32.mrf.mxu0
        %1151 = vmatprep.mubr.bf16.mxu0 %v821
        %1152 = vmatmul.mubr.bf16.gmra.mxu0 %v820
        %v1153 = vpop.f32.mrf.mxu0
        %v1154 = vadd.f32 %v917, %v1153
        %v1155 = vpop.f32.mrf.mxu0
        %v1156 = vpop.f32.mrf.mxu0
        %v1157 = vadd.f32 %v917, %v1156
        %v1158 = vpop.f32.mrf.mxu0
        %1159 = vmatprep.mubr.bf16.mxu0 %v825
        %1160 = vmatmul.mubr.bf16.gmra.mxu0 %v824
        %v1161 = vpop.f32.mrf.mxu0
        %v1162 = vadd.f32 %v917, %v1161
        %v1163 = vpop.f32.mrf.mxu0
        %v1164 = vpop.f32.mrf.mxu0
        %v1165 = vadd.f32 %v917, %v1164
        %v1166 = vpop.f32.mrf.mxu0
        %1167 = vmatprep.mubr.bf16.mxu0 %v829
        %1168 = vmatmul.mubr.bf16.gmra.mxu0 %v828
        %v1169 = vpop.f32.mrf.mxu0
        %v1170 = vadd.f32 %v917, %v1169
        %v1171 = vpop.f32.mrf.mxu0
        %v1172 = vpop.f32.mrf.mxu0
        %v1173 = vadd.f32 %v917, %v1172
        %v1174 = vpop.f32.mrf.mxu0
        %1175 = vmatprep.mubr.bf16.mxu0 %v833
        %1176 = vmatmul.mubr.bf16.gmra.mxu0 %v832
        %v1177 = vpop.f32.mrf.mxu0
        %v1178 = vadd.f32 %v917, %v1177
        %v1179 = vpop.f32.mrf.mxu0
        %v1180 = vpop.f32.mrf.mxu0
        %v1181 = vadd.f32 %v917, %v1180
        %v1182 = vpop.f32.mrf.mxu0
        %1183 = vmatprep.mubr.bf16.mxu0 %v837
        %1184 = vmatmul.mubr.bf16.gmra.mxu0 %v836
        %v1185 = vpop.f32.mrf.mxu0
        %v1186 = vadd.f32 %v917, %v1185
        %v1187 = vpop.f32.mrf.mxu0
        %v1188 = vpop.f32.mrf.mxu0
        %v1189 = vadd.f32 %v917, %v1188
        %v1190 = vpop.f32.mrf.mxu0
        %1191 = vmatprep.mubr.bf16.mxu0 %v841
        %1192 = vmatmul.mubr.bf16.gmra.mxu0 %v840
        %v1193 = vpop.f32.mrf.mxu0
        %v1194 = vadd.f32 %v917, %v1193
        %v1195 = vpop.f32.mrf.mxu0
        %v1196 = vpop.f32.mrf.mxu0
        %v1197 = vadd.f32 %v917, %v1196
        %v1198 = vpop.f32.mrf.mxu0
        %1199 = vmatprep.mubr.bf16.mxu0 %v845
        %1200 = vmatmul.mubr.bf16.gmra.mxu0 %v844
        %v1201 = vpop.f32.mrf.mxu0
        %v1202 = vadd.f32 %v917, %v1201
        %v1203 = vpop.f32.mrf.mxu0
        %v1204 = vpop.f32.mrf.mxu0
        %v1205 = vadd.f32 %v917, %v1204
        %v1206 = vpop.f32.mrf.mxu0
        %1207 = vdwg.mxu0
        %1208 = vmatprep.subr.bf16.mxu0 0
        %1209 = vmatpush1.bf16.msra.mxu0 %v1070
        %1210 = vmatprep.subr.bf16.mxu0 0
        %1211 = vmatpush1.bf16.msra.mxu0 %v1069
        %1212 = vmatprep.subr.bf16.mxu0 0
        %1213 = vmatpush1.bf16.msra.mxu0 %v1068
        %1214 = vmatprep.subr.bf16.mxu0 0
        %1215 = vmatpush1.bf16.msra.mxu0 %v1067
        %1216 = vmatprep.subr.bf16.mxu0 0
        %1217 = vmatpush1.bf16.msra.mxu0 %v1066
        %1218 = vmatprep.subr.bf16.mxu0 0
        %1219 = vmatpush1.bf16.msra.mxu0 %v1065
        %1220 = vmatprep.subr.bf16.mxu0 0
        %1221 = vmatpush1.bf16.msra.mxu0 %v1064
        %1222 = vmatprep.subr.bf16.mxu0 0
        %1223 = vmatpush1.bf16.msra.mxu0 %v1063
        %1224 = vmatprep.subr.bf16.mxu0 0
        %1225 = vmatpush2.bf16.msra.mxu0 %v1078
        %1226 = vmatprep.subr.bf16.mxu0 0
        %1227 = vmatpush2.bf16.msra.mxu0 %v1077
        %1228 = vmatprep.subr.bf16.mxu0 0
        %1229 = vmatpush2.bf16.msra.mxu0 %v1076
        %1230 = vmatprep.subr.bf16.mxu0 0
        %1231 = vmatpush2.bf16.msra.mxu0 %v1075
        %1232 = vmatprep.subr.bf16.mxu0 0
        %1233 = vmatpush2.bf16.msra.mxu0 %v1074
        %1234 = vmatprep.subr.bf16.mxu0 0
        %1235 = vmatpush2.bf16.msra.mxu0 %v1073
        %1236 = vmatprep.subr.bf16.mxu0 0
        %1237 = vmatpush2.bf16.msra.mxu0 %v1072
        %1238 = vmatprep.subr.bf16.mxu0 0
        %1239 = vmatpush2.bf16.msra.mxu0 %v1071
        %1240 = vmatprep.mubr.bf16.mxu0 %v819
        %1241 = vmatmul.mubr.bf16.gmra.mxu0 %v818
        %v1242 = vpop.f32.mrf.mxu0
        %v1243 = vadd.f32 %v1146, %v1242
        %v1244 = vpop.f32.mrf.mxu0
        %v1245 = vpop.f32.mrf.mxu0
        %v1246 = vadd.f32 %v1149, %v1245
        %v1247 = vpop.f32.mrf.mxu0
        %1248 = vmatprep.mubr.bf16.mxu0 %v823
        %1249 = vmatmul.mubr.bf16.gmra.mxu0 %v822
        %v1250 = vpop.f32.mrf.mxu0
        %v1251 = vadd.f32 %v1154, %v1250
        %v1252 = vpop.f32.mrf.mxu0
        %v1253 = vpop.f32.mrf.mxu0
        %v1254 = vadd.f32 %v1157, %v1253
        %v1255 = vpop.f32.mrf.mxu0
        %1256 = vmatprep.mubr.bf16.mxu0 %v827
        %1257 = vmatmul.mubr.bf16.gmra.mxu0 %v826
        %v1258 = vpop.f32.mrf.mxu0
        %v1259 = vadd.f32 %v1162, %v1258
        %v1260 = vpop.f32.mrf.mxu0
        %v1261 = vpop.f32.mrf.mxu0
        %v1262 = vadd.f32 %v1165, %v1261
        %v1263 = vpop.f32.mrf.mxu0
        %1264 = vmatprep.mubr.bf16.mxu0 %v831
        %1265 = vmatmul.mubr.bf16.gmra.mxu0 %v830
        %v1266 = vpop.f32.mrf.mxu0
        %v1267 = vadd.f32 %v1170, %v1266
        %v1268 = vpop.f32.mrf.mxu0
        %v1269 = vpop.f32.mrf.mxu0
        %v1270 = vadd.f32 %v1173, %v1269
        %v1271 = vpop.f32.mrf.mxu0
        %1272 = vmatprep.mubr.bf16.mxu0 %v835
        %1273 = vmatmul.mubr.bf16.gmra.mxu0 %v834
        %v1274 = vpop.f32.mrf.mxu0
        %v1275 = vadd.f32 %v1178, %v1274
        %v1276 = vpop.f32.mrf.mxu0
        %v1277 = vpop.f32.mrf.mxu0
        %v1278 = vadd.f32 %v1181, %v1277
        %v1279 = vpop.f32.mrf.mxu0
        %1280 = vmatprep.mubr.bf16.mxu0 %v839
        %1281 = vmatmul.mubr.bf16.gmra.mxu0 %v838
        %v1282 = vpop.f32.mrf.mxu0
        %v1283 = vadd.f32 %v1186, %v1282
        %v1284 = vpop.f32.mrf.mxu0
        %v1285 = vpop.f32.mrf.mxu0
        %v1286 = vadd.f32 %v1189, %v1285
        %v1287 = vpop.f32.mrf.mxu0
        %1288 = vmatprep.mubr.bf16.mxu0 %v843
        %1289 = vmatmul.mubr.bf16.gmra.mxu0 %v842
        %v1290 = vpop.f32.mrf.mxu0
        %v1291 = vadd.f32 %v1194, %v1290
        %v1292 = vpop.f32.mrf.mxu0
        %v1293 = vpop.f32.mrf.mxu0
        %v1294 = vadd.f32 %v1197, %v1293
        %v1295 = vpop.f32.mrf.mxu0
        %1296 = vmatprep.mubr.bf16.mxu0 %v847
        %1297 = vmatmul.mubr.bf16.gmra.mxu0 %v846
        %v1298 = vpop.f32.mrf.mxu0
        %v1299 = vadd.f32 %v1202, %v1298
        %v1300 = vpop.f32.mrf.mxu0
        %v1301 = vpop.f32.mrf.mxu0
        %v1302 = vadd.f32 %v1205, %v1301
        %v1303 = vpop.f32.mrf.mxu0
        %1304 = vdwg.mxu0
        %1305 = vst [vmem:[%s284] sm:$0xff] %v1243
        %1306 = vst [vmem:[%s284 + $0x8] sm:$0xff] %v1246
        %1307 = vst [vmem:[%s284 + $0x10] sm:$0xff] %v1251
        %1308 = vst [vmem:[%s284 + $0x18] sm:$0xff] %v1254
        %1309 = vst [vmem:[%s284 + $0x20] sm:$0xff] %v1259
        %1310 = vst [vmem:[%s284 + $0x28] sm:$0xff] %v1262
        %1311 = vst [vmem:[%s284 + $0x30] sm:$0xff] %v1267
        %1312 = vst [vmem:[%s284 + $0x38] sm:$0xff] %v1270
        %1313 = vst [vmem:[%s284 + $0x40] sm:$0xff] %v1275
        %1314 = vst [vmem:[%s284 + $0x48] sm:$0xff] %v1278
        %1315 = vst [vmem:[%s284 + $0x50] sm:$0xff] %v1283
        %1316 = vst [vmem:[%s284 + $0x58] sm:$0xff] %v1286
        %1317 = vst [vmem:[%s284 + $0x60] sm:$0xff] %v1291
        %1318 = vst [vmem:[%s284 + $0x68] sm:$0xff] %v1294
        %1319 = vst [vmem:[%s284 + $0x70] sm:$0xff] %v1299
        %1320 = vst [vmem:[%s284 + $0x78] sm:$0xff] %v1302
        %s1321 = sand.u32 %s142, 1
        %s1322 = scalar_lea.sflag [#allocation4], %s1321
        %s1323 = sand.u32 %s142, 1
        %s1324 = smul.addr %s1323, 128
        %s1325 = scalar_lea.vmem [#allocation10], %s1324
        // Predicated region
        $region57: #{tpu_custom_call.1} parent=39 // pred_check
          %p1326 = pneg %p152
        $region58: #{tpu_custom_call.1} parent=39 // pred_check_branch
          %1328 = sbr.rel (%p1326) target = $region60
        $region59: #{tpu_custom_call.1} parent=39 // pred_region
          %s1329 = smul.u32 16, %s24
          %s1331 = ssub.s32 2048, 2048
          %1332 = vsyncadd %s1322, %s1331
          %s1333 = smul.addr %s1329, 128
          %s1334 = scalar_lea.hbm %s5, %s1333
          %s1335 = sshll.u32 %s1325, 4
          %s1336 = int_to_ptr.vmem [resolvable:$true] %s1335
          %1341 = dma.vmem_to_hbm [thread:$0]  %s1336, 2048, %s1334, %s1322, 128, 128, 8
        $region60: #{tpu_custom_call.1} parent=39 // pred_fallthru
          _
      $region40: #{tpu_custom_call.1} parent=5 // pred_fallthru
        _
      %p1342 = scmp.le.s32.totalorder 2, %s19
      // Predicated region
      $region61: #{tpu_custom_call.1} parent=5 // pred_check
        %p1343 = pneg %p1342
      $region62: #{tpu_custom_call.1} parent=5 // pred_check_branch
        %1345 = sbr.rel (%p1343) target = $region64
      $region63: #{tpu_custom_call.1} parent=5 // pred_region
        %s1346 = ssub.s32 %s19, 2
        // Predicated region
        $region65: #{tpu_custom_call.1} parent=63 // pred_check
          %p1347 = pneg %p158
        $region66: #{tpu_custom_call.1} parent=63 // pred_check_branch
          %1349 = sbr.rel (%p1347) target = $region68
        $region67: #{tpu_custom_call.1} parent=63 // pred_region
          %s1350 = sand.u32 %s143, 1
          %s1351 = scalar_lea.sflag [#allocation4], %s1350
          %s1352 = sand.u32 %s143, 1
          %s1353 = smul.addr %s1352, 128
          %s1354 = scalar_lea.vmem [#allocation10], %s1353
          %1355 = dma.done %s1351, 2048
        $region68: #{tpu_custom_call.1} parent=63 // pred_fallthru
          _
      $region64: #{tpu_custom_call.1} parent=5 // pred_fallthru
        _
    $region6: #{tpu_custom_call.1} parent=1 // loop_footer
      %s23 = sadd.s32 1, %s19
    $region7: #{tpu_custom_call.1} parent=1 // loop_footer_branch
      %18 = sbr.rel target = $region3
    $region8: #{tpu_custom_call.1} parent=1 // loop_exit
      _
    %1356 = vsyncpa [#allocation3], 1
    %s1357 = scalar_lea.sflag [#allocation3], 1
    %1358 = vsyncpa %s1357, 1
    %1359 = vsyncpa [#allocation6], 1
    %1360 = vsyncpa [#allocation9], 1
    %1361 = vsyncpa [#allocation4], 1
    %s1362 = scalar_lea.sflag [#allocation4], 1
    %1363 = vsyncpa %s1362, 1

</llo_original>
